<compile_context>
chip_gen: v6e
topology: v6e:2x2x1
jax: 0.10.0
libtpu: 0.0.40
codegen_flags: <defaults>
</compile_context>

<pallas_src>
import functools

import jax
import jax.numpy as jnp
from jax.experimental import pallas as pl
from jax.experimental.pallas import tpu as pltpu


def _fused_mlp_kernel(*refs, num_layers: int):
    """All Linear(+LeakyReLU) layers back-to-back on a (features, tb) tile."""
    x_ref = refs[0]                  # (Din, tb)
    o_ref = refs[-1]                 # (Dout, tb)
    p = refs[1:-1]                   # (w1, b1, w2, b2, ..., wN, bN)
    x = x_ref[...]
    for i in range(num_layers):
        w = p[2 * i][...]            # (Do, Di)  -- PyTorch-native layout
        b = p[2 * i + 1][...]        # (Do, 1)   -- broadcasts along lanes
        x = jnp.dot(w, x, preferred_element_type=jnp.float32) + b
        if i < num_layers - 1:
            # F.leaky_relu default negative_slope = 0.01
            x = jnp.where(x > 0, x, jnp.float32(0.01) * x)
    o_ref[...] = x.astype(o_ref.dtype)


def _round_up(x: int, m: int) -> int:
    return ((x + m - 1) // m) * m


def _choose_batch_tile(batch: int) -> int:
    """Largest lane tile (multiple of 128) that still yields >= 2 grid steps.

    Big tiles amortize the ~0.35 us/grid-step overhead; >= 2 steps keeps the
    pipeline alive and lets the 'parallel' axis span both v7x TensorCores.
    Capped at 2048 so hidden activations (hidden_dim x tb f32) stay gentle on
    vreg/VMEM pressure at these feature widths.
    """
    b128 = _round_up(batch, 128)
    for tb in (2048, 1024, 512, 256, 128):
        if b128 >= 2 * tb:
            return tb
    return b128  # tiny batch: single lane-padded tile (>= 128), grid = 1


def qnetwork_forward(state, params):
    """state: (B, Din) -> (B, Dout).

    params: tuple of (w: (Do, Di), b: (Do, 1)) in PyTorch-native layout.
    """
    x = state.astype(jnp.float32)
    B, Din = x.shape
    Dout = params[-1][0].shape[0]
    num_layers = len(params)

    tb = _choose_batch_tile(B)
    B_pad = _round_up(B, tb)

    # Transposed, lane-dense activation layout: (features, batch).
    x_t = x.T
    if B_pad != B:
        x_t = jnp.pad(x_t, ((0, 0), (0, B_pad - B)))

    grid = (B_pad // tb,)

    # Activation tile streams over the batch (lane) axis; every weight/bias
    # block equals the full array and is VMEM-resident at every grid step.
    x_spec = pl.BlockSpec((Din, tb), lambda i: (0, i))
    out_spec = pl.BlockSpec((Dout, tb), lambda i: (0, i))
    param_specs = []
    flat_params = []
    for w, b in params:
        param_specs.append(pl.BlockSpec(w.shape, lambda i: (0, 0)))
        param_specs.append(pl.BlockSpec(b.shape, lambda i: (0, 0)))
        flat_params.extend((w, b))

    kernel = functools.partial(_fused_mlp_kernel, num_layers=num_layers)
    out_t = pl.pallas_call(
        kernel,
        out_shape=jax.ShapeDtypeStruct((Dout, B_pad), jnp.float32),
        grid_spec=pl.GridSpec(
            grid=grid,
            in_specs=[x_spec] + param_specs,
            out_specs=out_spec,
        ),
        compiler_params=pltpu.CompilerParams(
            # Batch tiles are independent -> shard grid steps across the two
            # TensorCores on v7x; harmless on single-TC v5e/v6e.
            dimension_semantics=("parallel",),
        ),
    )(x_t, *flat_params)

    return out_t[:, :B].T


_qnetwork_forward_jit = jax.jit(qnetwork_forward)


class QNetworkPallas:
    """Pallas port of the PyTorch QNetwork forward pass (single fused kernel)."""

    def __init__(self, state_size, action_size, hidden_layers, seed=42):
        key = jax.random.PRNGKey(seed)
        layer_sizes = [state_size] + list(hidden_layers) + [action_size]
        params = []
        for fan_in, fan_out in zip(layer_sizes[:-1], layer_sizes[1:]):
            key, kw, kb = jax.random.split(key, 3)
            # Deterministic init (uniform, PyTorch-Linear-style bound); synthetic weights.
            bound = 1.0 / float(fan_in) ** 0.5
            w = jax.random.uniform(kw, (fan_out, fan_in), jnp.float32, -bound, bound)
            b = jax.random.uniform(kb, (fan_out, 1), jnp.float32, -bound, bound)
            params.append((w, b))
        self.params = tuple(params)

    def __call__(self, state):
        return _qnetwork_forward_jit(state, self.params)


def _reference_forward(state, params):
    x = state.astype(jnp.float32)
    for i, (w, b) in enumerate(params):
        x = x @ w.T + b[:, 0]
        if i < len(params) - 1:
            x = jnp.where(x > 0, x, 0.01 * x)
    return x


if __name__ == "__main__":
    # Small shapes consistent with the module: state_size=8, hidden=[32, 32], actions=4.
    batch, state_size, action_size = 2, 8, 4
    hidden_layers = [32, 32]

    net = QNetworkPallas(state_size, action_size, hidden_layers, seed=42)

    key = jax.random.PRNGKey(0)
    state = jax.random.normal(key, (batch, state_size), dtype=jnp.float32)

    q_values = net(state)
    jax.block_until_ready(q_values)

    assert q_values.shape == (batch, action_size), q_values.shape
    assert q_values.dtype == jnp.float32

    ref = _reference_forward(state, net.params)
    assert jnp.allclose(q_values, ref, atol=1e-5, rtol=1e-5)

    # Multi-step grid path (B=512 -> tb=256, grid=(2,), dual-TC split on v7x).
    key2 = jax.random.PRNGKey(1)
    state_big = jax.random.normal(key2, (512, state_size), dtype=jnp.float32)
    q_big = net(state_big)
    jax.block_until_ready(q_big)
    ref_big = _reference_forward(state_big, net.params)
    assert q_big.shape == (512, action_size)
    assert jnp.allclose(q_big, ref_big, atol=1e-5, rtol=1e-5)

    # Non-multiple-of-128 batch -> wrapper-side padding path (B=300 -> pad 384).
    key3 = jax.random.PRNGKey(2)
    state_odd = jax.random.normal(key3, (300, state_size), dtype=jnp.float32)
    q_odd = net(state_odd)
    jax.block_until_ready(q_odd)
    ref_odd = _reference_forward(state_odd, net.params)
    assert q_odd.shape == (300, action_size)
    assert jnp.allclose(q_odd, ref_odd, atol=1e-5, rtol=1e-5)

    print("KERNEL_OK")
</pallas_src>

<mosaic_0001>
module attributes {stable_mosaic.version = 11 : i64} {
  func.func @_fused_mlp_kernel(%arg0: i32, %arg1: memref<8x128xf32, #tpu.memory_space<vmem>>, %arg2: memref<32x8xf32, #tpu.memory_space<vmem>>, %arg3: memref<32x1xf32, #tpu.memory_space<vmem>>, %arg4: memref<32x32xf32, #tpu.memory_space<vmem>>, %arg5: memref<32x1xf32, #tpu.memory_space<vmem>>, %arg6: memref<4x32xf32, #tpu.memory_space<vmem>>, %arg7: memref<4x1xf32, #tpu.memory_space<vmem>>, %arg8: memref<4x128xf32, #tpu.memory_space<vmem>>) attributes {dimension_semantics = [#tpu.dimension_semantics<parallel>], iteration_bounds = array<i64: 1>, scalar_prefetch = 0 : i64, scratch_operands = 0 : i64, tpu.core_type = #tpu.core_type<tc>, window_params = [{transform_indices = @transform_0, window_bounds = array<i64: 8, 128>}, {pipeline_mode = #tpu.pipeline_mode<synchronous>, transform_indices = @transform_1, window_bounds = array<i64: 32, 8>}, {pipeline_mode = #tpu.pipeline_mode<synchronous>, transform_indices = @transform_2, window_bounds = array<i64: 32, 1>}, {pipeline_mode = #tpu.pipeline_mode<synchronous>, transform_indices = @transform_3, window_bounds = array<i64: 32, 32>}, {pipeline_mode = #tpu.pipeline_mode<synchronous>, transform_indices = @transform_4, window_bounds = array<i64: 32, 1>}, {pipeline_mode = #tpu.pipeline_mode<synchronous>, transform_indices = @transform_5, window_bounds = array<i64: 4, 32>}, {pipeline_mode = #tpu.pipeline_mode<synchronous>, transform_indices = @transform_6, window_bounds = array<i64: 4, 1>}, {transform_indices = @transform_7, window_bounds = array<i64: 4, 128>}]} {
    %c0 = arith.constant 0 : index
    %c0_0 = arith.constant 0 : index
    %0 = vector.load %arg1[%c0, %c0_0] : memref<8x128xf32, #tpu.memory_space<vmem>>, vector<8x128xf32>
    %c0_1 = arith.constant 0 : index
    %c0_2 = arith.constant 0 : index
    %1 = vector.load %arg2[%c0_1, %c0_2] : memref<32x8xf32, #tpu.memory_space<vmem>>, vector<32x8xf32>
    %c0_3 = arith.constant 0 : index
    %c0_4 = arith.constant 0 : index
    %2 = vector.load %arg3[%c0_3, %c0_4] : memref<32x1xf32, #tpu.memory_space<vmem>>, vector<32x1xf32>
    %cst = arith.constant dense<0.000000e+00> : vector<32x128xf32>
    %3 = tpu.matmul %1, %0, %cst {dimension_numbers = #tpu.dot_dimension_numbers<[1], [0], [0], [1], [0, 0, 1, 1], [], []>} : vector<32x8xf32>, vector<8x128xf32>, vector<32x128xf32> -> vector<32x128xf32>
    %4 = vector.broadcast %2 : vector<32x1xf32> to vector<32x128xf32>
    %5 = arith.addf %3, %4 : vector<32x128xf32>
    %cst_5 = arith.constant 0.000000e+00 : f32
    %6 = vector.broadcast %cst_5 : f32 to vector<32x128xf32>
    %7 = arith.cmpf ogt, %5, %6 : vector<32x128xf32>
    %cst_6 = arith.constant 0.00999999977 : f32
    %8 = vector.broadcast %cst_6 : f32 to vector<32x128xf32>
    %9 = arith.mulf %8, %5 : vector<32x128xf32>
    %10 = arith.select %7, %5, %9 : vector<32x128xi1>, vector<32x128xf32>
    %c0_7 = arith.constant 0 : index
    %c0_8 = arith.constant 0 : index
    %11 = vector.load %arg4[%c0_7, %c0_8] : memref<32x32xf32, #tpu.memory_space<vmem>>, vector<32x32xf32>
    %c0_9 = arith.constant 0 : index
    %c0_10 = arith.constant 0 : index
    %12 = vector.load %arg5[%c0_9, %c0_10] : memref<32x1xf32, #tpu.memory_space<vmem>>, vector<32x1xf32>
    %cst_11 = arith.constant dense<0.000000e+00> : vector<32x128xf32>
    %13 = tpu.matmul %11, %10, %cst_11 {dimension_numbers = #tpu.dot_dimension_numbers<[1], [0], [0], [1], [0, 0, 1, 1], [], []>} : vector<32x32xf32>, vector<32x128xf32>, vector<32x128xf32> -> vector<32x128xf32>
    %14 = vector.broadcast %12 : vector<32x1xf32> to vector<32x128xf32>
    %15 = arith.addf %13, %14 : vector<32x128xf32>
    %cst_12 = arith.constant 0.000000e+00 : f32
    %16 = vector.broadcast %cst_12 : f32 to vector<32x128xf32>
    %17 = arith.cmpf ogt, %15, %16 : vector<32x128xf32>
    %cst_13 = arith.constant 0.00999999977 : f32
    %18 = vector.broadcast %cst_13 : f32 to vector<32x128xf32>
    %19 = arith.mulf %18, %15 : vector<32x128xf32>
    %20 = arith.select %17, %15, %19 : vector<32x128xi1>, vector<32x128xf32>
    %c0_14 = arith.constant 0 : index
    %c0_15 = arith.constant 0 : index
    %21 = vector.load %arg6[%c0_14, %c0_15] : memref<4x32xf32, #tpu.memory_space<vmem>>, vector<4x32xf32>
    %c0_16 = arith.constant 0 : index
    %c0_17 = arith.constant 0 : index
    %22 = vector.load %arg7[%c0_16, %c0_17] : memref<4x1xf32, #tpu.memory_space<vmem>>, vector<4x1xf32>
    %cst_18 = arith.constant dense<0.000000e+00> : vector<4x128xf32>
    %23 = tpu.matmul %21, %20, %cst_18 {dimension_numbers = #tpu.dot_dimension_numbers<[1], [0], [0], [1], [0, 0, 1, 1], [], []>} : vector<4x32xf32>, vector<32x128xf32>, vector<4x128xf32> -> vector<4x128xf32>
    %24 = vector.broadcast %22 : vector<4x1xf32> to vector<4x128xf32>
    %25 = arith.addf %23, %24 : vector<4x128xf32>
    %c0_19 = arith.constant 0 : index
    %c0_20 = arith.constant 0 : index
    %26 = vector.load %arg8[%c0_19, %c0_20] : memref<4x128xf32, #tpu.memory_space<vmem>>, vector<4x128xf32>
    tpu.vector_store %arg8[%c0_19, %c0_20], %25 {strides = array<i32>} : memref<4x128xf32, #tpu.memory_space<vmem>>, vector<4x128xf32>,
    return
  }
  func.func @transform_0(%arg0: i32) -> (i32, i32) {
    %c0_i32 = arith.constant 0 : i32
    %c0_i32_0 = arith.constant 0 : i32
    return %c0_i32, %arg0 : i32, i32
  }
  func.func @transform_1(%arg0: i32) -> (i32, i32) {
    %c0_i32 = arith.constant 0 : i32
    %c0_i32_0 = arith.constant 0 : i32
    %c0_i32_1 = arith.constant 0 : i32
    return %c0_i32, %c0_i32_0 : i32, i32
  }
  func.func @transform_2(%arg0: i32) -> (i32, i32) {
    %c0_i32 = arith.constant 0 : i32
    %c0_i32_0 = arith.constant 0 : i32
    %c0_i32_1 = arith.constant 0 : i32
    return %c0_i32, %c0_i32_0 : i32, i32
  }
  func.func @transform_3(%arg0: i32) -> (i32, i32) {
    %c0_i32 = arith.constant 0 : i32
    %c0_i32_0 = arith.constant 0 : i32
    %c0_i32_1 = arith.constant 0 : i32
    return %c0_i32, %c0_i32_0 : i32, i32
  }
  func.func @transform_4(%arg0: i32) -> (i32, i32) {
    %c0_i32 = arith.constant 0 : i32
    %c0_i32_0 = arith.constant 0 : i32
    %c0_i32_1 = arith.constant 0 : i32
    return %c0_i32, %c0_i32_0 : i32, i32
  }
  func.func @transform_5(%arg0: i32) -> (i32, i32) {
    %c0_i32 = arith.constant 0 : i32
    %c0_i32_0 = arith.constant 0 : i32
    %c0_i32_1 = arith.constant 0 : i32
    return %c0_i32, %c0_i32_0 : i32, i32
  }
  func.func @transform_6(%arg0: i32) -> (i32, i32) {
    %c0_i32 = arith.constant 0 : i32
    %c0_i32_0 = arith.constant 0 : i32
    %c0_i32_1 = arith.constant 0 : i32
    return %c0_i32, %c0_i32_0 : i32, i32
  }
  func.func @transform_7(%arg0: i32) -> (i32, i32) {
    %c0_i32 = arith.constant 0 : i32
    %c0_i32_0 = arith.constant 0 : i32
    return %c0_i32, %arg0 : i32, i32
  }
}

</mosaic_0001>

<llo_original>
// kernel: qnetwork_forward.1
$region0: #{qnetwork_forward.1}
  #allocation0 [shape = 'u32[]', space=smem, size = 0x4, offset = 0x4, fixed_abs, tag = 'smem constant byte address 0x4 - core index']
  #allocation1 [shape = 'u32[144,128]{1,0:T(1,128)}', space=vmem, size = 0x12000, scoped, tag = 'internal scratch']
  %s0 = inlined_call_operand.vmem [shape: f32[8,128], index: 0, kind: input, shape index: {}]
  %s1 = inlined_call_operand.vmem [shape: f32[32,8], index: 1, kind: input, shape index: {}]
  %s2 = inlined_call_operand.vmem [shape: f32[32,1], index: 2, kind: input, shape index: {}]
  %s3 = inlined_call_operand.vmem [shape: f32[32,32], index: 3, kind: input, shape index: {}]
  %s4 = inlined_call_operand.vmem [shape: f32[32,1], index: 4, kind: input, shape index: {}]
  %s5 = inlined_call_operand.vmem [shape: f32[4,32], index: 5, kind: input, shape index: {}]
  %s6 = inlined_call_operand.vmem [shape: f32[4,1], index: 6, kind: input, shape index: {}]
  %s7 = inlined_call_operand.vmem [shape: f32[4,128], index: 7, kind: output, shape index: {}]
  %s8 = sld [smem:[#allocation0]]
  $region38: #{qnetwork_forward.1} parent=0
    _
  %s10 = ssub.s32 1, %s8
  %s11 = scalar_select 0, %s10, %s8
  // Predicated region
  $region2: #{qnetwork_forward.1} parent=0 // pred_check
    _
  $region3: #{qnetwork_forward.1} parent=0 // pred_check_branch
    %13 = sbr.rel (0) target = $region5
  $region4: #{qnetwork_forward.1} parent=0 // pred_region
    _
  $region5: #{qnetwork_forward.1} parent=0 // pred_fallthru
    _
  // Predicated region
  $region6: #{qnetwork_forward.1} parent=0 // pred_check
    _
  $region7: #{qnetwork_forward.1} parent=0 // pred_check_branch
    %15 = sbr.rel (0) target = $region9
  $region8: #{qnetwork_forward.1} parent=0 // pred_region
    _
  $region9: #{qnetwork_forward.1} parent=0 // pred_fallthru
    _
  // Predicated region
  $region10: #{qnetwork_forward.1} parent=0 // pred_check
    _
  $region11: #{qnetwork_forward.1} parent=0 // pred_check_branch
    %17 = sbr.rel (0) target = $region13
  $region12: #{qnetwork_forward.1} parent=0 // pred_region
    _
  $region13: #{qnetwork_forward.1} parent=0 // pred_fallthru
    _
  // Predicated region
  $region14: #{qnetwork_forward.1} parent=0 // pred_check
    _
  $region15: #{qnetwork_forward.1} parent=0 // pred_check_branch
    %19 = sbr.rel (0) target = $region17
  $region16: #{qnetwork_forward.1} parent=0 // pred_region
    _
  $region17: #{qnetwork_forward.1} parent=0 // pred_fallthru
    _
  // Predicated region
  $region18: #{qnetwork_forward.1} parent=0 // pred_check
    _
  $region19: #{qnetwork_forward.1} parent=0 // pred_check_branch
    %21 = sbr.rel (0) target = $region21
  $region20: #{qnetwork_forward.1} parent=0 // pred_region
    _
  $region21: #{qnetwork_forward.1} parent=0 // pred_fallthru
    _
  // Predicated region
  $region22: #{qnetwork_forward.1} parent=0 // pred_check
    _
  $region23: #{qnetwork_forward.1} parent=0 // pred_check_branch
    %23 = sbr.rel (0) target = $region25
  $region24: #{qnetwork_forward.1} parent=0 // pred_region
    _
  $region25: #{qnetwork_forward.1} parent=0 // pred_fallthru
    _
  // Predicated region
  $region26: #{qnetwork_forward.1} parent=0 // pred_check
    _
  $region27: #{qnetwork_forward.1} parent=0 // pred_check_branch
    %25 = sbr.rel (0) target = $region29
  $region28: #{qnetwork_forward.1} parent=0 // pred_region
    _
  $region29: #{qnetwork_forward.1} parent=0 // pred_fallthru
    _
  %v26 = vld [vmem:[%s0] sm:$0xff]
  %v27 = vld [vmem:[%s1] sm:$0xff]
  %v28 = vld [vmem:[%s1 + $0x8] sm:$0xff]
  %v29 = vld [vmem:[%s1 + $0x10] sm:$0xff]
  %v30 = vld [vmem:[%s1 + $0x18] sm:$0xff]
  %v31 = vld [vmem:[%s2] sm:$0xff]
  %v32 = vld [vmem:[%s2 + $0x8] sm:$0xff]
  %v33 = vld [vmem:[%s2 + $0x10] sm:$0xff]
  %v34 = vld [vmem:[%s2 + $0x18] sm:$0xff]
  %36 = vset.pattern.permute.xlu0 0
  %37 = vperm.xlu0 %36, %v31
  %v38 = vpop.permute.xlu0 %37
  %41 = vset.pattern.permute.xlu0 0
  %42 = vperm.xlu0 %41, %v32
  %v43 = vpop.permute.xlu0 %42
  %46 = vset.pattern.permute.xlu0 0
  %47 = vperm.xlu0 %46, %v33
  %v48 = vpop.permute.xlu0 %47
  %51 = vset.pattern.permute.xlu0 0
  %52 = vperm.xlu0 %51, %v34
  %v53 = vpop.permute.xlu0 %52
  %vm55 = vcmask 64512
  %v57 = vsel %vm55, %v27, 0
  %v60 = vsel %vm55, %v28, 0
  %v63 = vsel %vm55, %v29, 0
  %v66 = vsel %vm55, %v30, 0
  %68 = vmatprep.subr.mxu0 0.0
  %69 = vmatpush1.msra.mxu0 0.0
  %70 = vmatprep.subr.mxu0 0.0
  %71 = vmatpush1.msra.mxu0 0.0
  %72 = vmatprep.subr.mxu0 0.0
  %73 = vmatpush1.msra.mxu0 0.0
  %74 = vmatprep.subr.mxu0 0.0
  %75 = vmatpush1.msra.mxu0 0.0
  %76 = vmatprep.subr.mxu0 0.0
  %77 = vmatpush1.msra.mxu0 0.0
  %78 = vmatprep.subr.mxu0 0.0
  %79 = vmatpush1.msra.mxu0 0.0
  %80 = vmatprep.subr.mxu0 0.0
  %81 = vmatpush1.msra.mxu0 0.0
  %82 = vmatprep.subr.mxu0 0.0
  %83 = vmatpush1.msra.mxu0 0.0
  %84 = vmatprep.subr.mxu0 0.0
  %85 = vmatpush1.msra.mxu0 0.0
  %86 = vmatprep.subr.mxu0 0.0
  %87 = vmatpush1.msra.mxu0 0.0
  %88 = vmatprep.subr.mxu0 0.0
  %89 = vmatpush1.msra.mxu0 0.0
  %90 = vmatprep.subr.mxu0 0.0
  %91 = vmatpush1.msra.mxu0 0.0
  %92 = vmatprep.subr.mxu0 0.0
  %93 = vmatpush1.msra.mxu0 0.0
  %94 = vmatprep.subr.mxu0 0.0
  %95 = vmatpush1.msra.mxu0 0.0
  %96 = vmatprep.subr.mxu0 0.0
  %97 = vmatpush1.msra.mxu0 0.0
  %98 = vmatprep.subr.mxu0 0.0
  %99 = vmatpush1.msra.mxu0 %v26
  %100 = vmatprep.subr.mxu0 0.0
  %101 = vmatpush2.msra.mxu0 0.0
  %102 = vmatprep.subr.mxu0 0.0
  %103 = vmatpush2.msra.mxu0 0.0
  %104 = vmatprep.subr.mxu0 0.0
  %105 = vmatpush2.msra.mxu0 0.0
  %106 = vmatprep.subr.mxu0 0.0
  %107 = vmatpush2.msra.mxu0 0.0
  %108 = vmatprep.subr.mxu0 0.0
  %109 = vmatpush2.msra.mxu0 0.0
  %110 = vmatprep.subr.mxu0 0.0
  %111 = vmatpush2.msra.mxu0 0.0
  %112 = vmatprep.subr.mxu0 0.0
  %113 = vmatpush2.msra.mxu0 0.0
  %114 = vmatprep.subr.mxu0 0.0
  %115 = vmatpush2.msra.mxu0 0.0
  %116 = vmatprep.subr.mxu0 0.0
  %117 = vmatpush2.msra.mxu0 0.0
  %118 = vmatprep.subr.mxu0 0.0
  %119 = vmatpush2.msra.mxu0 0.0
  %120 = vmatprep.subr.mxu0 0.0
  %121 = vmatpush2.msra.mxu0 0.0
  %122 = vmatprep.subr.mxu0 0.0
  %123 = vmatpush2.msra.mxu0 0.0
  %124 = vmatprep.subr.mxu0 0.0
  %125 = vmatpush2.msra.mxu0 0.0
  %126 = vmatprep.subr.mxu0 0.0
  %127 = vmatpush2.msra.mxu0 0.0
  %128 = vmatprep.subr.mxu0 0.0
  %129 = vmatpush2.msra.mxu0 0.0
  %130 = vmatprep.subr.mxu0 0.0
  %131 = vmatpush2.msra.mxu0 0.0
  %132 = vmatprep.mubr.f32.mxu0 0.0
  %133 = vmatmul.mubr.f32.gmra.mxu0 %v57
  %v134 = vpop.f32.mrf.mxu0
  %v135 = vadd.f32 %v38, %v134
  %v136 = vpop.f32.mrf.mxu0
  %137 = vmatprep.mubr.f32.mxu0 0.0
  %138 = vmatmul.mubr.f32.gmra.mxu0 %v60
  %v139 = vpop.f32.mrf.mxu0
  %v140 = vadd.f32 %v43, %v139
  %v141 = vpop.f32.mrf.mxu0
  %142 = vmatprep.mubr.f32.mxu0 0.0
  %143 = vmatmul.mubr.f32.gmra.mxu0 %v63
  %v144 = vpop.f32.mrf.mxu0
  %v145 = vadd.f32 %v48, %v144
  %v146 = vpop.f32.mrf.mxu0
  %147 = vmatprep.mubr.f32.mxu0 0.0
  %148 = vmatmul.mubr.f32.gmra.mxu0 %v66
  %v149 = vpop.f32.mrf.mxu0
  %v150 = vadd.f32 %v53, %v149
  %v151 = vpop.f32.mrf.mxu0
  %152 = vdwg.mxu0
  %vm153 = vcmp.gt.f32.partialorder %v135, 0.0
  %vm154 = vcmp.gt.f32.partialorder %v140, 0.0
  %vm155 = vcmp.gt.f32.partialorder %v145, 0.0
  %vm156 = vcmp.gt.f32.partialorder %v150, 0.0
  %v157 = vmul.f32 %v135, 0.01
  %v158 = vmul.f32 %v140, 0.01
  %v159 = vmul.f32 %v145, 0.01
  %v160 = vmul.f32 %v150, 0.01
  %v161 = vsel %vm153, %v135, %v157
  %v162 = vsel %vm154, %v140, %v158
  %v163 = vsel %vm155, %v145, %v159
  %v164 = vsel %vm156, %v150, %v160
  %v165 = vld [vmem:[%s3] sm:$0xff]
  %v166 = vld [vmem:[%s3 + $0x8] sm:$0xff]
  %v167 = vld [vmem:[%s3 + $0x10] sm:$0xff]
  %v168 = vld [vmem:[%s3 + $0x18] sm:$0xff]
  %v169 = vld [vmem:[%s4] sm:$0xff]
  %v170 = vld [vmem:[%s4 + $0x8] sm:$0xff]
  %v171 = vld [vmem:[%s4 + $0x10] sm:$0xff]
  %v172 = vld [vmem:[%s4 + $0x18] sm:$0xff]
  %174 = vset.pattern.permute.xlu0 0
  %175 = vperm.xlu0 %174, %v169
  %v176 = vpop.permute.xlu0 %175
  %179 = vset.pattern.permute.xlu0 0
  %180 = vperm.xlu0 %179, %v170
  %v181 = vpop.permute.xlu0 %180
  %184 = vset.pattern.permute.xlu0 0
  %185 = vperm.xlu0 %184, %v171
  %v186 = vpop.permute.xlu0 %185
  %189 = vset.pattern.permute.xlu0 0
  %190 = vperm.xlu0 %189, %v172
  %v191 = vpop.permute.xlu0 %190
  %vm193 = vcmask 261120
  %v195 = vsel %vm193, %v165, 0
  %v198 = vsel %vm193, %v166, 0
  %v201 = vsel %vm193, %v167, 0
  %v204 = vsel %vm193, %v168, 0
  %206 = vmatprep.subr.mxu0 0.0
  %207 = vmatpush1.msra.mxu0 0.0
  %208 = vmatprep.subr.mxu0 0.0
  %209 = vmatpush1.msra.mxu0 0.0
  %210 = vmatprep.subr.mxu0 0.0
  %211 = vmatpush1.msra.mxu0 0.0
  %212 = vmatprep.subr.mxu0 0.0
  %213 = vmatpush1.msra.mxu0 0.0
  %214 = vmatprep.subr.mxu0 0.0
  %215 = vmatpush1.msra.mxu0 0.0
  %216 = vmatprep.subr.mxu0 0.0
  %217 = vmatpush1.msra.mxu0 0.0
  %218 = vmatprep.subr.mxu0 0.0
  %219 = vmatpush1.msra.mxu0 0.0
  %220 = vmatprep.subr.mxu0 0.0
  %221 = vmatpush1.msra.mxu0 0.0
  %222 = vmatprep.subr.mxu0 0.0
  %223 = vmatpush1.msra.mxu0 0.0
  %224 = vmatprep.subr.mxu0 0.0
  %225 = vmatpush1.msra.mxu0 0.0
  %226 = vmatprep.subr.mxu0 0.0
  %227 = vmatpush1.msra.mxu0 0.0
  %228 = vmatprep.subr.mxu0 0.0
  %229 = vmatpush1.msra.mxu0 0.0
  %230 = vmatprep.subr.mxu0 0.0
  %231 = vmatpush1.msra.mxu0 %v164
  %232 = vmatprep.subr.mxu0 0.0
  %233 = vmatpush1.msra.mxu0 %v163
  %234 = vmatprep.subr.mxu0 0.0
  %235 = vmatpush1.msra.mxu0 %v162
  %236 = vmatprep.subr.mxu0 0.0
  %237 = vmatpush1.msra.mxu0 %v161
  %238 = vmatprep.subr.mxu0 0.0
  %239 = vmatpush2.msra.mxu0 0.0
  %240 = vmatprep.subr.mxu0 0.0
  %241 = vmatpush2.msra.mxu0 0.0
  %242 = vmatprep.subr.mxu0 0.0
  %243 = vmatpush2.msra.mxu0 0.0
  %244 = vmatprep.subr.mxu0 0.0
  %245 = vmatpush2.msra.mxu0 0.0
  %246 = vmatprep.subr.mxu0 0.0
  %247 = vmatpush2.msra.mxu0 0.0
  %248 = vmatprep.subr.mxu0 0.0
  %249 = vmatpush2.msra.mxu0 0.0
  %250 = vmatprep.subr.mxu0 0.0
  %251 = vmatpush2.msra.mxu0 0.0
  %252 = vmatprep.subr.mxu0 0.0
  %253 = vmatpush2.msra.mxu0 0.0
  %254 = vmatprep.subr.mxu0 0.0
  %255 = vmatpush2.msra.mxu0 0.0
  %256 = vmatprep.subr.mxu0 0.0
  %257 = vmatpush2.msra.mxu0 0.0
  %258 = vmatprep.subr.mxu0 0.0
  %259 = vmatpush2.msra.mxu0 0.0
  %260 = vmatprep.subr.mxu0 0.0
  %261 = vmatpush2.msra.mxu0 0.0
  %262 = vmatprep.subr.mxu0 0.0
  %263 = vmatpush2.msra.mxu0 0.0
  %264 = vmatprep.subr.mxu0 0.0
  %265 = vmatpush2.msra.mxu0 0.0
  %266 = vmatprep.subr.mxu0 0.0
  %267 = vmatpush2.msra.mxu0 0.0
  %268 = vmatprep.subr.mxu0 0.0
  %269 = vmatpush2.msra.mxu0 0.0
  %270 = vmatprep.mubr.f32.mxu0 0.0
  %271 = vmatmul.mubr.f32.gmra.mxu0 %v195
  %v272 = vpop.f32.mrf.mxu0
  %v273 = vadd.f32 %v176, %v272
  %v274 = vpop.f32.mrf.mxu0
  %275 = vmatprep.mubr.f32.mxu0 0.0
  %276 = vmatmul.mubr.f32.gmra.mxu0 %v198
  %v277 = vpop.f32.mrf.mxu0
  %v278 = vadd.f32 %v181, %v277
  %v279 = vpop.f32.mrf.mxu0
  %280 = vmatprep.mubr.f32.mxu0 0.0
  %281 = vmatmul.mubr.f32.gmra.mxu0 %v201
  %v282 = vpop.f32.mrf.mxu0
  %v283 = vadd.f32 %v186, %v282
  %v284 = vpop.f32.mrf.mxu0
  %285 = vmatprep.mubr.f32.mxu0 0.0
  %286 = vmatmul.mubr.f32.gmra.mxu0 %v204
  %v287 = vpop.f32.mrf.mxu0
  %v288 = vadd.f32 %v191, %v287
  %v289 = vpop.f32.mrf.mxu0
  %290 = vdwg.mxu0
  %vm291 = vcmp.gt.f32.partialorder %v273, 0.0
  %vm292 = vcmp.gt.f32.partialorder %v278, 0.0
  %vm293 = vcmp.gt.f32.partialorder %v283, 0.0
  %vm294 = vcmp.gt.f32.partialorder %v288, 0.0
  %v295 = vmul.f32 %v273, 0.01
  %v296 = vmul.f32 %v278, 0.01
  %v297 = vmul.f32 %v283, 0.01
  %v298 = vmul.f32 %v288, 0.01
  %v299 = vsel %vm291, %v273, %v295
  %v300 = vsel %vm292, %v278, %v296
  %v301 = vsel %vm293, %v283, %v297
  %v302 = vsel %vm294, %v288, %v298
  %v303 = vld [vmem:[%s5] sm:$0xf]
  %v304 = vld [vmem:[%s6] sm:$0xf]
  %306 = vset.pattern.permute.xlu0 0
  %307 = vperm.xlu0 %306, %v304
  %v308 = vpop.permute.xlu0 %307
  %v311 = vsel %vm193, %v303, 0
  %313 = vmatprep.subr.mxu0 0.0
  %314 = vmatpush1.msra.mxu0 0.0
  %315 = vmatprep.subr.mxu0 0.0
  %316 = vmatpush1.msra.mxu0 0.0
  %317 = vmatprep.subr.mxu0 0.0
  %318 = vmatpush1.msra.mxu0 0.0
  %319 = vmatprep.subr.mxu0 0.0
  %320 = vmatpush1.msra.mxu0 0.0
  %321 = vmatprep.subr.mxu0 0.0
  %322 = vmatpush1.msra.mxu0 0.0
  %323 = vmatprep.subr.mxu0 0.0
  %324 = vmatpush1.msra.mxu0 0.0
  %325 = vmatprep.subr.mxu0 0.0
  %326 = vmatpush1.msra.mxu0 0.0
  %327 = vmatprep.subr.mxu0 0.0
  %328 = vmatpush1.msra.mxu0 0.0
  %329 = vmatprep.subr.mxu0 0.0
  %330 = vmatpush1.msra.mxu0 0.0
  %331 = vmatprep.subr.mxu0 0.0
  %332 = vmatpush1.msra.mxu0 0.0
  %333 = vmatprep.subr.mxu0 0.0
  %334 = vmatpush1.msra.mxu0 0.0
  %335 = vmatprep.subr.mxu0 0.0
  %336 = vmatpush1.msra.mxu0 0.0
  %337 = vmatprep.subr.mxu0 0.0
  %338 = vmatpush1.msra.mxu0 %v302
  %339 = vmatprep.subr.mxu0 0.0
  %340 = vmatpush1.msra.mxu0 %v301
  %341 = vmatprep.subr.mxu0 0.0
  %342 = vmatpush1.msra.mxu0 %v300
  %343 = vmatprep.subr.mxu0 0.0
  %344 = vmatpush1.msra.mxu0 %v299
  %345 = vmatprep.subr.mxu0 0.0
  %346 = vmatpush2.msra.mxu0 0.0
  %347 = vmatprep.subr.mxu0 0.0
  %348 = vmatpush2.msra.mxu0 0.0
  %349 = vmatprep.subr.mxu0 0.0
  %350 = vmatpush2.msra.mxu0 0.0
  %351 = vmatprep.subr.mxu0 0.0
  %352 = vmatpush2.msra.mxu0 0.0
  %353 = vmatprep.subr.mxu0 0.0
  %354 = vmatpush2.msra.mxu0 0.0
  %355 = vmatprep.subr.mxu0 0.0
  %356 = vmatpush2.msra.mxu0 0.0
  %357 = vmatprep.subr.mxu0 0.0
  %358 = vmatpush2.msra.mxu0 0.0
  %359 = vmatprep.subr.mxu0 0.0
  %360 = vmatpush2.msra.mxu0 0.0
  %361 = vmatprep.subr.mxu0 0.0
  %362 = vmatpush2.msra.mxu0 0.0
  %363 = vmatprep.subr.mxu0 0.0
  %364 = vmatpush2.msra.mxu0 0.0
  %365 = vmatprep.subr.mxu0 0.0
  %366 = vmatpush2.msra.mxu0 0.0
  %367 = vmatprep.subr.mxu0 0.0
  %368 = vmatpush2.msra.mxu0 0.0
  %369 = vmatprep.subr.mxu0 0.0
  %370 = vmatpush2.msra.mxu0 0.0
  %371 = vmatprep.subr.mxu0 0.0
  %372 = vmatpush2.msra.mxu0 0.0
  %373 = vmatprep.subr.mxu0 0.0
  %374 = vmatpush2.msra.mxu0 0.0
  %375 = vmatprep.subr.mxu0 0.0
  %376 = vmatpush2.msra.mxu0 0.0
  %377 = vmatprep.mubr.f32.mxu0 0.0
  %378 = vmatmul.mubr.f32.gmra.mxu0 %v311
  %v379 = vpop.f32.mrf.mxu0
  %v380 = vadd.f32 %v308, %v379
  %v381 = vpop.f32.mrf.mxu0
  %382 = vdwg.mxu0
  %383 = vst [vmem:[%s7] sm:$0xf] %v380
  // Predicated region
  $region30: #{qnetwork_forward.1} parent=0 // pred_check
    _
  $region31: #{qnetwork_forward.1} parent=0 // pred_check_branch
    %385 = sbr.rel (0) target = $region33
  $region32: #{qnetwork_forward.1} parent=0 // pred_region
    _
  $region33: #{qnetwork_forward.1} parent=0 // pred_fallthru
    _
  // Predicated region
  $region34: #{qnetwork_forward.1} parent=0 // pred_check
    _
  $region35: #{qnetwork_forward.1} parent=0 // pred_check_branch
    %387 = sbr.rel (0) target = $region37
  $region36: #{qnetwork_forward.1} parent=0 // pred_region
    _
  $region37: #{qnetwork_forward.1} parent=0 // pred_fallthru
    _

</llo_original>
